<compile_context>
chip_gen: v6e
topology: v6e:2x2x1
jax: 0.10.0
libtpu: 0.0.40
codegen_flags: <defaults>
</compile_context>

<pallas_src>
import jax
import jax.numpy as jnp
from jax.experimental import pallas as pl
from jax.experimental.pallas import tpu as pltpu


def _mlp_softmax_kernel(x_ref, w1_ref, b1_ref, w2_ref, b2_ref, w3_ref, b3_ref, o_ref):
    # Feature-major: x_ref [num_inputs, TB]; weights [out, in]; biases [out, 1]; out [C, TB].
    x = x_ref[...]  # streamed dtype (f32 or bf16) goes straight to the MXU

    # Linear(num_inputs, 5) + ReLU
    h1 = jnp.dot(w1_ref[...], x, preferred_element_type=jnp.float32) + b1_ref[...]
    h1 = jnp.maximum(h1, 0.0)

    # Linear(5, 20) + ReLU
    h2 = jnp.dot(w2_ref[...], h1, preferred_element_type=jnp.float32) + b2_ref[...]
    h2 = jnp.maximum(h2, 0.0)

    # Linear(20, num_classes)
    logits = jnp.dot(w3_ref[...], h2, preferred_element_type=jnp.float32) + b3_ref[...]

    # Dropout(p=0.3): identity in eval mode.
    # TODO(synk): training-mode dropout needs an in-kernel PRNG mask + 1/(1-p) scaling.

    # Softmax over the class axis (axis 0, <= num_classes sublanes). Exact divide for exact
    # normalization (compute is not the bottleneck here).
    m = jnp.max(logits, axis=0, keepdims=True)
    e = jnp.exp(logits - m)
    denom = jnp.sum(e, axis=0, keepdims=True)
    o_ref[...] = (e / denom).astype(o_ref.dtype)


def our_module_forward_fm(x_fm, params, *, block_rows=16384):
    """Feature-major forward. x_fm: [num_inputs, B]; returns probs [num_classes, B] (f32)."""
    num_inputs, B = x_fm.shape
    num_classes = params["w3"].shape[0]

    # Lane-dim (batch) tile: a multiple of 128, or the full batch if it is small.
    # Aim for >=2 grid steps so v7x's two TensorCores both get work (no-op on v5e/v6e).
    br = max(128, (int(block_rows) // 128) * 128)
    if B <= 128:
        tb = B
    else:
        half = ((-(-B // 2)) + 127) // 128 * 128
        tb = max(128, min(br, half))
    grid = (pl.cdiv(B, tb),)

    # First matmul runs in the streamed dtype (weights are tiny and VMEM-resident anyway).
    w1 = params["w1"].astype(x_fm.dtype)

    def resident(arr):
        # Full-array block + constant block index -> stays VMEM-resident across grid steps.
        return pl.BlockSpec(arr.shape, lambda i: (0, 0))

    itemsize = jnp.dtype(x_fm.dtype).itemsize
    cost = pl.CostEstimate(
        flops=2 * B * (num_inputs * 5 + 5 * 20 + 20 * num_classes),
        transcendentals=B * num_classes,
        bytes_accessed=B * (num_inputs * itemsize + num_classes * 4),
    )

    out = pl.pallas_call(
        _mlp_softmax_kernel,
        out_shape=jax.ShapeDtypeStruct((num_classes, B), jnp.float32),
        grid=grid,
        in_specs=[
            pl.BlockSpec((num_inputs, tb), lambda i: (0, i)),   # streamed batch-column tiles
            resident(w1), resident(params["b1"]),
            resident(params["w2"]), resident(params["b2"]),
            resident(params["w3"]), resident(params["b3"]),
        ],
        out_specs=pl.BlockSpec((num_classes, tb), lambda i: (0, i)),
        compiler_params=pltpu.CompilerParams(
            dimension_semantics=("parallel",),
        ),
        cost_estimate=cost,
    )(x_fm, w1, params["b1"], params["w2"], params["b2"], params["w3"], params["b3"])
    return out


def our_module_forward(x, params, *, block_rows=16384):
    """PyTorch-layout convenience wrapper. x: [B, num_inputs]; returns probs [B, num_classes].
    (Transposes in/out; produce x feature-major upstream to avoid the extra layout passes.)"""
    out_fm = our_module_forward_fm(x.T, params, block_rows=block_rows)
    return out_fm.T


def init_params(key, num_inputs, num_classes):
    """PyTorch Linear default init (U[-1/sqrt(fan_in), 1/sqrt(fan_in)]).
    Weights stored in PyTorch [out, in] orientation; biases as [out, 1]."""
    dims = [(num_inputs, 5), (5, 20), (20, num_classes)]
    params = {}
    for i, (fan_in, fan_out) in enumerate(dims, start=1):
        key, kw, kb = jax.random.split(key, 3)
        bound = 1.0 / jnp.sqrt(jnp.float32(fan_in))
        params[f"w{i}"] = jax.random.uniform(kw, (fan_out, fan_in), jnp.float32, -bound, bound)
        params[f"b{i}"] = jax.random.uniform(kb, (fan_out, 1), jnp.float32, -bound, bound)
    return params


def reference_forward(x, params):
    h1 = jnp.maximum(x @ params["w1"].T + params["b1"].T, 0.0)
    h2 = jnp.maximum(h1 @ params["w2"].T + params["b2"].T, 0.0)
    logits = h2 @ params["w3"].T + params["b3"].T
    return jax.nn.softmax(logits, axis=1)


if __name__ == "__main__":
    key = jax.random.PRNGKey(0)
    k_x, k_x2, k_p = jax.random.split(key, 3)

    num_inputs, num_classes = 32, 10
    params = init_params(k_p, num_inputs, num_classes)

    # --- Test 1: small batch, single full-extent tile (grid = 1) -------------------------
    batch = 8
    x = jax.random.normal(k_x, (batch, num_inputs), dtype=jnp.float32)
    out = jax.block_until_ready(our_module_forward(x, params))
    ref = reference_forward(x, params)
    assert out.shape == (batch, num_classes)
    assert bool(jnp.all(jnp.isfinite(out)))
    assert jnp.allclose(out, ref, atol=1e-2, rtol=1e-2)
    assert jnp.allclose(jnp.sum(out, axis=1), jnp.ones((batch,)), atol=1e-3)

    # --- Test 2: multi-step grid with a partial last block (no host padding) -------------
    batch2 = 300
    x2 = jax.random.normal(k_x2, (batch2, num_inputs), dtype=jnp.float32)
    out2 = jax.block_until_ready(our_module_forward(x2, params, block_rows=128))  # grid = 3
    ref2 = reference_forward(x2, params)
    assert out2.shape == (batch2, num_classes)
    assert bool(jnp.all(jnp.isfinite(out2)))
    assert jnp.allclose(out2, ref2, atol=1e-2, rtol=1e-2)
    assert jnp.allclose(jnp.sum(out2, axis=1), jnp.ones((batch2,)), atol=1e-3)

    # --- Test 3: bf16-streamed x (halves the dominant HBM read); looser tolerance --------
    x_bf16 = x.astype(jnp.bfloat16)
    out3 = jax.block_until_ready(our_module_forward(x_bf16, params))
    assert out3.shape == (batch, num_classes)
    assert bool(jnp.all(jnp.isfinite(out3)))
    assert jnp.allclose(out3, ref, atol=5e-2, rtol=5e-2)
    assert jnp.allclose(jnp.sum(out3, axis=1), jnp.ones((batch,)), atol=1e-2)

    print("KERNEL_OK")
</pallas_src>

<mosaic_0001>
module attributes {stable_mosaic.version = 11 : i64} {
  func.func @_mlp_softmax_kernel(%arg0: i32, %arg1: memref<32x8xf32, #tpu.memory_space<vmem>>, %arg2: memref<5x32xf32, #tpu.memory_space<vmem>>, %arg3: memref<5x1xf32, #tpu.memory_space<vmem>>, %arg4: memref<20x5xf32, #tpu.memory_space<vmem>>, %arg5: memref<20x1xf32, #tpu.memory_space<vmem>>, %arg6: memref<10x20xf32, #tpu.memory_space<vmem>>, %arg7: memref<10x1xf32, #tpu.memory_space<vmem>>, %arg8: memref<10x8xf32, #tpu.memory_space<vmem>>) attributes {dimension_semantics = [#tpu.dimension_semantics<parallel>], iteration_bounds = array<i64: 1>, scalar_prefetch = 0 : i64, scratch_operands = 0 : i64, tpu.core_type = #tpu.core_type<tc>, window_params = [{transform_indices = @transform_0, window_bounds = array<i64: 32, 8>}, {pipeline_mode = #tpu.pipeline_mode<synchronous>, transform_indices = @transform_1, window_bounds = array<i64: 5, 32>}, {pipeline_mode = #tpu.pipeline_mode<synchronous>, transform_indices = @transform_2, window_bounds = array<i64: 5, 1>}, {pipeline_mode = #tpu.pipeline_mode<synchronous>, transform_indices = @transform_3, window_bounds = array<i64: 20, 5>}, {pipeline_mode = #tpu.pipeline_mode<synchronous>, transform_indices = @transform_4, window_bounds = array<i64: 20, 1>}, {pipeline_mode = #tpu.pipeline_mode<synchronous>, transform_indices = @transform_5, window_bounds = array<i64: 10, 20>}, {pipeline_mode = #tpu.pipeline_mode<synchronous>, transform_indices = @transform_6, window_bounds = array<i64: 10, 1>}, {transform_indices = @transform_7, window_bounds = array<i64: 10, 8>}]} {
    %c0 = arith.constant 0 : index
    %c0_0 = arith.constant 0 : index
    %0 = vector.load %arg1[%c0, %c0_0] : memref<32x8xf32, #tpu.memory_space<vmem>>, vector<32x8xf32>
    %c0_1 = arith.constant 0 : index
    %c0_2 = arith.constant 0 : index
    %1 = vector.load %arg2[%c0_1, %c0_2] : memref<5x32xf32, #tpu.memory_space<vmem>>, vector<5x32xf32>
    %cst = arith.constant dense<0.000000e+00> : vector<5x8xf32>
    %2 = tpu.matmul %1, %0, %cst {dimension_numbers = #tpu.dot_dimension_numbers<[1], [0], [0], [1], [0, 0, 1, 1], [], []>} : vector<5x32xf32>, vector<32x8xf32>, vector<5x8xf32> -> vector<5x8xf32>
    %c0_3 = arith.constant 0 : index
    %c0_4 = arith.constant 0 : index
    %3 = vector.load %arg3[%c0_3, %c0_4] : memref<5x1xf32, #tpu.memory_space<vmem>>, vector<5x1xf32>
    %4 = vector.broadcast %3 : vector<5x1xf32> to vector<5x8xf32>
    %5 = arith.addf %2, %4 : vector<5x8xf32>
    %cst_5 = arith.constant 0.000000e+00 : f32
    %6 = vector.broadcast %cst_5 : f32 to vector<5x8xf32>
    %7 = arith.maximumf %5, %6 : vector<5x8xf32>
    %c0_6 = arith.constant 0 : index
    %c0_7 = arith.constant 0 : index
    %8 = vector.load %arg4[%c0_6, %c0_7] : memref<20x5xf32, #tpu.memory_space<vmem>>, vector<20x5xf32>
    %cst_8 = arith.constant dense<0.000000e+00> : vector<20x8xf32>
    %9 = tpu.matmul %8, %7, %cst_8 {dimension_numbers = #tpu.dot_dimension_numbers<[1], [0], [0], [1], [0, 0, 1, 1], [], []>} : vector<20x5xf32>, vector<5x8xf32>, vector<20x8xf32> -> vector<20x8xf32>
    %c0_9 = arith.constant 0 : index
    %c0_10 = arith.constant 0 : index
    %10 = vector.load %arg5[%c0_9, %c0_10] : memref<20x1xf32, #tpu.memory_space<vmem>>, vector<20x1xf32>
    %11 = vector.broadcast %10 : vector<20x1xf32> to vector<20x8xf32>
    %12 = arith.addf %9, %11 : vector<20x8xf32>
    %cst_11 = arith.constant 0.000000e+00 : f32
    %13 = vector.broadcast %cst_11 : f32 to vector<20x8xf32>
    %14 = arith.maximumf %12, %13 : vector<20x8xf32>
    %c0_12 = arith.constant 0 : index
    %c0_13 = arith.constant 0 : index
    %15 = vector.load %arg6[%c0_12, %c0_13] : memref<10x20xf32, #tpu.memory_space<vmem>>, vector<10x20xf32>
    %cst_14 = arith.constant dense<0.000000e+00> : vector<10x8xf32>
    %16 = tpu.matmul %15, %14, %cst_14 {dimension_numbers = #tpu.dot_dimension_numbers<[1], [0], [0], [1], [0, 0, 1, 1], [], []>} : vector<10x20xf32>, vector<20x8xf32>, vector<10x8xf32> -> vector<10x8xf32>
    %c0_15 = arith.constant 0 : index
    %c0_16 = arith.constant 0 : index
    %17 = vector.load %arg7[%c0_15, %c0_16] : memref<10x1xf32, #tpu.memory_space<vmem>>, vector<10x1xf32>
    %18 = vector.broadcast %17 : vector<10x1xf32> to vector<10x8xf32>
    %19 = arith.addf %16, %18 : vector<10x8xf32>
    %cst_17 = arith.constant dense<0xFF800000> : vector<8xf32>
    %20 = vector.multi_reduction <maximumf>, %19, %cst_17 [0] : vector<10x8xf32> to vector<8xf32>
    %21 = vector.shape_cast %20 : vector<8xf32> to vector<1x8xf32>
    %22 = vector.broadcast %21 : vector<1x8xf32> to vector<10x8xf32>
    %23 = arith.subf %19, %22 : vector<10x8xf32>
    %24 = math.exp %23 : vector<10x8xf32>
    %cst_18 = arith.constant dense<0.000000e+00> : vector<8xf32>
    %25 = vector.multi_reduction <add>, %24, %cst_18 [0] : vector<10x8xf32> to vector<8xf32>
    %26 = vector.shape_cast %25 : vector<8xf32> to vector<1x8xf32>
    %27 = vector.broadcast %26 : vector<1x8xf32> to vector<10x8xf32>
    %28 = arith.divf %24, %27 : vector<10x8xf32>
    %c0_19 = arith.constant 0 : index
    %c0_20 = arith.constant 0 : index
    %29 = vector.load %arg8[%c0_19, %c0_20] : memref<10x8xf32, #tpu.memory_space<vmem>>, vector<10x8xf32>
    tpu.vector_store %arg8[%c0_19, %c0_20], %28 {strides = array<i32>} : memref<10x8xf32, #tpu.memory_space<vmem>>, vector<10x8xf32>,
    return
  }
  func.func @transform_0(%arg0: i32) -> (i32, i32) {
    %c0_i32 = arith.constant 0 : i32
    %c0_i32_0 = arith.constant 0 : i32
    return %c0_i32, %arg0 : i32, i32
  }
  func.func @transform_1(%arg0: i32) -> (i32, i32) {
    %c0_i32 = arith.constant 0 : i32
    %c0_i32_0 = arith.constant 0 : i32
    %c0_i32_1 = arith.constant 0 : i32
    return %c0_i32, %c0_i32_0 : i32, i32
  }
  func.func @transform_2(%arg0: i32) -> (i32, i32) {
    %c0_i32 = arith.constant 0 : i32
    %c0_i32_0 = arith.constant 0 : i32
    %c0_i32_1 = arith.constant 0 : i32
    return %c0_i32, %c0_i32_0 : i32, i32
  }
  func.func @transform_3(%arg0: i32) -> (i32, i32) {
    %c0_i32 = arith.constant 0 : i32
    %c0_i32_0 = arith.constant 0 : i32
    %c0_i32_1 = arith.constant 0 : i32
    return %c0_i32, %c0_i32_0 : i32, i32
  }
  func.func @transform_4(%arg0: i32) -> (i32, i32) {
    %c0_i32 = arith.constant 0 : i32
    %c0_i32_0 = arith.constant 0 : i32
    %c0_i32_1 = arith.constant 0 : i32
    return %c0_i32, %c0_i32_0 : i32, i32
  }
  func.func @transform_5(%arg0: i32) -> (i32, i32) {
    %c0_i32 = arith.constant 0 : i32
    %c0_i32_0 = arith.constant 0 : i32
    %c0_i32_1 = arith.constant 0 : i32
    return %c0_i32, %c0_i32_0 : i32, i32
  }
  func.func @transform_6(%arg0: i32) -> (i32, i32) {
    %c0_i32 = arith.constant 0 : i32
    %c0_i32_0 = arith.constant 0 : i32
    %c0_i32_1 = arith.constant 0 : i32
    return %c0_i32, %c0_i32_0 : i32, i32
  }
  func.func @transform_7(%arg0: i32) -> (i32, i32) {
    %c0_i32 = arith.constant 0 : i32
    %c0_i32_0 = arith.constant 0 : i32
    return %c0_i32, %arg0 : i32, i32
  }
}

</mosaic_0001>

<llo_original>
// kernel: tpu_custom_call.1
$region0: #{tpu_custom_call.1}
  #allocation0 [shape = 'u32[]', space=smem, size = 0x4, offset = 0x4, fixed_abs, tag = 'smem constant byte address 0x4 - core index']
  #allocation1 [shape = 'u32[144,128]{1,0:T(1,128)}', space=vmem, size = 0x12000, scoped, tag = 'internal scratch']
  %s0 = inlined_call_operand.vmem [shape: f32[32,8], index: 0, kind: input, shape index: {}]
  %s1 = inlined_call_operand.vmem [shape: f32[5,32], index: 1, kind: input, shape index: {}]
  %s2 = inlined_call_operand.vmem [shape: f32[5,1], index: 2, kind: input, shape index: {}]
  %s3 = inlined_call_operand.vmem [shape: f32[20,5], index: 3, kind: input, shape index: {}]
  %s4 = inlined_call_operand.vmem [shape: f32[20,1], index: 4, kind: input, shape index: {}]
  %s5 = inlined_call_operand.vmem [shape: f32[10,20], index: 5, kind: input, shape index: {}]
  %s6 = inlined_call_operand.vmem [shape: f32[10,1], index: 6, kind: input, shape index: {}]
  %s7 = inlined_call_operand.vmem [shape: f32[10,8], index: 7, kind: output, shape index: {}]
  %s8 = sld [smem:[#allocation0]]
  $region38: #{tpu_custom_call.1} parent=0
    _
  %s10 = ssub.s32 1, %s8
  %s11 = scalar_select 0, %s10, %s8
  // Predicated region
  $region2: #{tpu_custom_call.1} parent=0 // pred_check
    _
  $region3: #{tpu_custom_call.1} parent=0 // pred_check_branch
    %13 = sbr.rel (0) target = $region5
  $region4: #{tpu_custom_call.1} parent=0 // pred_region
    _
  $region5: #{tpu_custom_call.1} parent=0 // pred_fallthru
    _
  // Predicated region
  $region6: #{tpu_custom_call.1} parent=0 // pred_check
    _
  $region7: #{tpu_custom_call.1} parent=0 // pred_check_branch
    %15 = sbr.rel (0) target = $region9
  $region8: #{tpu_custom_call.1} parent=0 // pred_region
    _
  $region9: #{tpu_custom_call.1} parent=0 // pred_fallthru
    _
  // Predicated region
  $region10: #{tpu_custom_call.1} parent=0 // pred_check
    _
  $region11: #{tpu_custom_call.1} parent=0 // pred_check_branch
    %17 = sbr.rel (0) target = $region13
  $region12: #{tpu_custom_call.1} parent=0 // pred_region
    _
  $region13: #{tpu_custom_call.1} parent=0 // pred_fallthru
    _
  // Predicated region
  $region14: #{tpu_custom_call.1} parent=0 // pred_check
    _
  $region15: #{tpu_custom_call.1} parent=0 // pred_check_branch
    %19 = sbr.rel (0) target = $region17
  $region16: #{tpu_custom_call.1} parent=0 // pred_region
    _
  $region17: #{tpu_custom_call.1} parent=0 // pred_fallthru
    _
  // Predicated region
  $region18: #{tpu_custom_call.1} parent=0 // pred_check
    _
  $region19: #{tpu_custom_call.1} parent=0 // pred_check_branch
    %21 = sbr.rel (0) target = $region21
  $region20: #{tpu_custom_call.1} parent=0 // pred_region
    _
  $region21: #{tpu_custom_call.1} parent=0 // pred_fallthru
    _
  // Predicated region
  $region22: #{tpu_custom_call.1} parent=0 // pred_check
    _
  $region23: #{tpu_custom_call.1} parent=0 // pred_check_branch
    %23 = sbr.rel (0) target = $region25
  $region24: #{tpu_custom_call.1} parent=0 // pred_region
    _
  $region25: #{tpu_custom_call.1} parent=0 // pred_fallthru
    _
  // Predicated region
  $region26: #{tpu_custom_call.1} parent=0 // pred_check
    _
  $region27: #{tpu_custom_call.1} parent=0 // pred_check_branch
    %25 = sbr.rel (0) target = $region29
  $region28: #{tpu_custom_call.1} parent=0 // pred_region
    _
  $region29: #{tpu_custom_call.1} parent=0 // pred_fallthru
    _
  %v26 = vld [vmem:[%s0] sm:$0xff]
  %v27 = vld [vmem:[%s0 + $0x8] sm:$0xff]
  %v28 = vld [vmem:[%s0 + $0x10] sm:$0xff]
  %v29 = vld [vmem:[%s0 + $0x18] sm:$0xff]
  %v30 = vld [vmem:[%s1] sm:$0x1f]
  %v31 = vld [vmem:[%s2] sm:$0x1f]
  %33 = vset.pattern.permute.xlu0 0
  %34 = vperm.xlu0 %33, %v31
  %v35 = vpop.permute.xlu0 %34
  %vm37 = vcmask 261120
  %v39 = vsel %vm37, %v30, 0
  %41 = vmatprep.subr.mxu0 0.0
  %42 = vmatpush1.msra.mxu0 0.0
  %43 = vmatprep.subr.mxu0 0.0
  %44 = vmatpush1.msra.mxu0 0.0
  %45 = vmatprep.subr.mxu0 0.0
  %46 = vmatpush1.msra.mxu0 0.0
  %47 = vmatprep.subr.mxu0 0.0
  %48 = vmatpush1.msra.mxu0 0.0
  %49 = vmatprep.subr.mxu0 0.0
  %50 = vmatpush1.msra.mxu0 0.0
  %51 = vmatprep.subr.mxu0 0.0
  %52 = vmatpush1.msra.mxu0 0.0
  %53 = vmatprep.subr.mxu0 0.0
  %54 = vmatpush1.msra.mxu0 0.0
  %55 = vmatprep.subr.mxu0 0.0
  %56 = vmatpush1.msra.mxu0 0.0
  %57 = vmatprep.subr.mxu0 0.0
  %58 = vmatpush1.msra.mxu0 0.0
  %59 = vmatprep.subr.mxu0 0.0
  %60 = vmatpush1.msra.mxu0 0.0
  %61 = vmatprep.subr.mxu0 0.0
  %62 = vmatpush1.msra.mxu0 0.0
  %63 = vmatprep.subr.mxu0 0.0
  %64 = vmatpush1.msra.mxu0 0.0
  %65 = vmatprep.subr.mxu0 0.0
  %66 = vmatpush1.msra.mxu0 %v29
  %67 = vmatprep.subr.mxu0 0.0
  %68 = vmatpush1.msra.mxu0 %v28
  %69 = vmatprep.subr.mxu0 0.0
  %70 = vmatpush1.msra.mxu0 %v27
  %71 = vmatprep.subr.mxu0 0.0
  %72 = vmatpush1.msra.mxu0 %v26
  %73 = vmatprep.subr.mxu0 0.0
  %74 = vmatpush2.msra.mxu0 0.0
  %75 = vmatprep.subr.mxu0 0.0
  %76 = vmatpush2.msra.mxu0 0.0
  %77 = vmatprep.subr.mxu0 0.0
  %78 = vmatpush2.msra.mxu0 0.0
  %79 = vmatprep.subr.mxu0 0.0
  %80 = vmatpush2.msra.mxu0 0.0
  %81 = vmatprep.subr.mxu0 0.0
  %82 = vmatpush2.msra.mxu0 0.0
  %83 = vmatprep.subr.mxu0 0.0
  %84 = vmatpush2.msra.mxu0 0.0
  %85 = vmatprep.subr.mxu0 0.0
  %86 = vmatpush2.msra.mxu0 0.0
  %87 = vmatprep.subr.mxu0 0.0
  %88 = vmatpush2.msra.mxu0 0.0
  %89 = vmatprep.subr.mxu0 0.0
  %90 = vmatpush2.msra.mxu0 0.0
  %91 = vmatprep.subr.mxu0 0.0
  %92 = vmatpush2.msra.mxu0 0.0
  %93 = vmatprep.subr.mxu0 0.0
  %94 = vmatpush2.msra.mxu0 0.0
  %95 = vmatprep.subr.mxu0 0.0
  %96 = vmatpush2.msra.mxu0 0.0
  %97 = vmatprep.subr.mxu0 0.0
  %98 = vmatpush2.msra.mxu0 0.0
  %99 = vmatprep.subr.mxu0 0.0
  %100 = vmatpush2.msra.mxu0 0.0
  %101 = vmatprep.subr.mxu0 0.0
  %102 = vmatpush2.msra.mxu0 0.0
  %103 = vmatprep.subr.mxu0 0.0
  %104 = vmatpush2.msra.mxu0 0.0
  %105 = vmatprep.mubr.f32.mxu0 0.0
  %106 = vmatmul.mubr.f32.gmra.mxu0 %v39
  %v107 = vpop.f32.mrf.mxu0
  %v108 = vadd.f32 %v35, %v107
  %v109 = vpop.f32.mrf.mxu0
  %110 = vdwg.mxu0
  %v111 = vmax.f32 %v108, 0.0
  %v112 = vld [vmem:[%s3] sm:$0xff]
  %v113 = vld [vmem:[%s3 + $0x8] sm:$0xff]
  %v114 = vld [vmem:[%s3 + $0x10] sm:$0xf]
  %v115 = vld [vmem:[%s4] sm:$0xff]
  %v116 = vld [vmem:[%s4 + $0x8] sm:$0xff]
  %v117 = vld [vmem:[%s4 + $0x10] sm:$0xf]
  %119 = vset.pattern.permute.xlu0 0
  %120 = vperm.xlu0 %119, %v115
  %v121 = vpop.permute.xlu0 %120
  %124 = vset.pattern.permute.xlu0 0
  %125 = vperm.xlu0 %124, %v116
  %v126 = vpop.permute.xlu0 %125
  %129 = vset.pattern.permute.xlu0 0
  %130 = vperm.xlu0 %129, %v117
  %v131 = vpop.permute.xlu0 %130
  %vm133 = vcmask 39936
  %v135 = vsel %vm133, %v112, 0
  %v138 = vsel %vm133, %v113, 0
  %v141 = vsel %vm133, %v114, 0
  %vm143 = vcmask 1044480
  %v145 = vsel %vm143, %v111, 0
  %147 = vmatprep.subr.mxu0 0.0
  %148 = vmatpush1.msra.mxu0 0.0
  %149 = vmatprep.subr.mxu0 0.0
  %150 = vmatpush1.msra.mxu0 0.0
  %151 = vmatprep.subr.mxu0 0.0
  %152 = vmatpush1.msra.mxu0 0.0
  %153 = vmatprep.subr.mxu0 0.0
  %154 = vmatpush1.msra.mxu0 0.0
  %155 = vmatprep.subr.mxu0 0.0
  %156 = vmatpush1.msra.mxu0 0.0
  %157 = vmatprep.subr.mxu0 0.0
  %158 = vmatpush1.msra.mxu0 0.0
  %159 = vmatprep.subr.mxu0 0.0
  %160 = vmatpush1.msra.mxu0 0.0
  %161 = vmatprep.subr.mxu0 0.0
  %162 = vmatpush1.msra.mxu0 0.0
  %163 = vmatprep.subr.mxu0 0.0
  %164 = vmatpush1.msra.mxu0 0.0
  %165 = vmatprep.subr.mxu0 0.0
  %166 = vmatpush1.msra.mxu0 0.0
  %167 = vmatprep.subr.mxu0 0.0
  %168 = vmatpush1.msra.mxu0 0.0
  %169 = vmatprep.subr.mxu0 0.0
  %170 = vmatpush1.msra.mxu0 0.0
  %171 = vmatprep.subr.mxu0 0.0
  %172 = vmatpush1.msra.mxu0 0.0
  %173 = vmatprep.subr.mxu0 0.0
  %174 = vmatpush1.msra.mxu0 0.0
  %175 = vmatprep.subr.mxu0 0.0
  %176 = vmatpush1.msra.mxu0 0.0
  %177 = vmatprep.subr.mxu0 0.0
  %178 = vmatpush1.msra.mxu0 %v145
  %179 = vmatprep.subr.mxu0 0.0
  %180 = vmatpush2.msra.mxu0 0.0
  %181 = vmatprep.subr.mxu0 0.0
  %182 = vmatpush2.msra.mxu0 0.0
  %183 = vmatprep.subr.mxu0 0.0
  %184 = vmatpush2.msra.mxu0 0.0
  %185 = vmatprep.subr.mxu0 0.0
  %186 = vmatpush2.msra.mxu0 0.0
  %187 = vmatprep.subr.mxu0 0.0
  %188 = vmatpush2.msra.mxu0 0.0
  %189 = vmatprep.subr.mxu0 0.0
  %190 = vmatpush2.msra.mxu0 0.0
  %191 = vmatprep.subr.mxu0 0.0
  %192 = vmatpush2.msra.mxu0 0.0
  %193 = vmatprep.subr.mxu0 0.0
  %194 = vmatpush2.msra.mxu0 0.0
  %195 = vmatprep.subr.mxu0 0.0
  %196 = vmatpush2.msra.mxu0 0.0
  %197 = vmatprep.subr.mxu0 0.0
  %198 = vmatpush2.msra.mxu0 0.0
  %199 = vmatprep.subr.mxu0 0.0
  %200 = vmatpush2.msra.mxu0 0.0
  %201 = vmatprep.subr.mxu0 0.0
  %202 = vmatpush2.msra.mxu0 0.0
  %203 = vmatprep.subr.mxu0 0.0
  %204 = vmatpush2.msra.mxu0 0.0
  %205 = vmatprep.subr.mxu0 0.0
  %206 = vmatpush2.msra.mxu0 0.0
  %207 = vmatprep.subr.mxu0 0.0
  %208 = vmatpush2.msra.mxu0 0.0
  %209 = vmatprep.subr.mxu0 0.0
  %210 = vmatpush2.msra.mxu0 0.0
  %211 = vmatprep.mubr.f32.mxu0 0.0
  %212 = vmatmul.mubr.f32.gmra.mxu0 %v135
  %v213 = vpop.f32.mrf.mxu0
  %v214 = vadd.f32 %v121, %v213
  %v215 = vpop.f32.mrf.mxu0
  %216 = vmatprep.mubr.f32.mxu0 0.0
  %217 = vmatmul.mubr.f32.gmra.mxu0 %v138
  %v218 = vpop.f32.mrf.mxu0
  %v219 = vadd.f32 %v126, %v218
  %v220 = vpop.f32.mrf.mxu0
  %221 = vmatprep.mubr.f32.mxu0 0.0
  %222 = vmatmul.mubr.f32.gmra.mxu0 %v141
  %v223 = vpop.f32.mrf.mxu0
  %v224 = vadd.f32 %v131, %v223
  %v225 = vpop.f32.mrf.mxu0
  %226 = vdwg.mxu0
  %v227 = vmax.f32 %v214, 0.0
  %v228 = vmax.f32 %v219, 0.0
  %v229 = vmax.f32 %v224, 0.0
  %v230 = vld [vmem:[%s5] sm:$0xff]
  %v231 = vld [vmem:[%s5 + $0x8] sm:$0x3]
  %v232 = vld [vmem:[%s6] sm:$0xff]
  %v233 = vld [vmem:[%s6 + $0x8] sm:$0x3]
  %235 = vset.pattern.permute.xlu0 0
  %236 = vperm.xlu0 %235, %v232
  %v237 = vpop.permute.xlu0 %236
  %240 = vset.pattern.permute.xlu0 0
  %241 = vperm.xlu0 %240, %v233
  %v242 = vpop.permute.xlu0 %241
  %vm244 = vcmask 162816
  %v246 = vsel %vm244, %v230, 0
  %v249 = vsel %vm244, %v231, 0
  %vm251 = vcmask 1043456
  %v253 = vsel %vm251, %v229, 0
  %255 = vmatprep.subr.mxu0 0.0
  %256 = vmatpush1.msra.mxu0 0.0
  %257 = vmatprep.subr.mxu0 0.0
  %258 = vmatpush1.msra.mxu0 0.0
  %259 = vmatprep.subr.mxu0 0.0
  %260 = vmatpush1.msra.mxu0 0.0
  %261 = vmatprep.subr.mxu0 0.0
  %262 = vmatpush1.msra.mxu0 0.0
  %263 = vmatprep.subr.mxu0 0.0
  %264 = vmatpush1.msra.mxu0 0.0
  %265 = vmatprep.subr.mxu0 0.0
  %266 = vmatpush1.msra.mxu0 0.0
  %267 = vmatprep.subr.mxu0 0.0
  %268 = vmatpush1.msra.mxu0 0.0
  %269 = vmatprep.subr.mxu0 0.0
  %270 = vmatpush1.msra.mxu0 0.0
  %271 = vmatprep.subr.mxu0 0.0
  %272 = vmatpush1.msra.mxu0 0.0
  %273 = vmatprep.subr.mxu0 0.0
  %274 = vmatpush1.msra.mxu0 0.0
  %275 = vmatprep.subr.mxu0 0.0
  %276 = vmatpush1.msra.mxu0 0.0
  %277 = vmatprep.subr.mxu0 0.0
  %278 = vmatpush1.msra.mxu0 0.0
  %279 = vmatprep.subr.mxu0 0.0
  %280 = vmatpush1.msra.mxu0 0.0
  %281 = vmatprep.subr.mxu0 0.0
  %282 = vmatpush1.msra.mxu0 %v253
  %283 = vmatprep.subr.mxu0 0.0
  %284 = vmatpush1.msra.mxu0 %v228
  %285 = vmatprep.subr.mxu0 0.0
  %286 = vmatpush1.msra.mxu0 %v227
  %287 = vmatprep.subr.mxu0 0.0
  %288 = vmatpush2.msra.mxu0 0.0
  %289 = vmatprep.subr.mxu0 0.0
  %290 = vmatpush2.msra.mxu0 0.0
  %291 = vmatprep.subr.mxu0 0.0
  %292 = vmatpush2.msra.mxu0 0.0
  %293 = vmatprep.subr.mxu0 0.0
  %294 = vmatpush2.msra.mxu0 0.0
  %295 = vmatprep.subr.mxu0 0.0
  %296 = vmatpush2.msra.mxu0 0.0
  %297 = vmatprep.subr.mxu0 0.0
  %298 = vmatpush2.msra.mxu0 0.0
  %299 = vmatprep.subr.mxu0 0.0
  %300 = vmatpush2.msra.mxu0 0.0
  %301 = vmatprep.subr.mxu0 0.0
  %302 = vmatpush2.msra.mxu0 0.0
  %303 = vmatprep.subr.mxu0 0.0
  %304 = vmatpush2.msra.mxu0 0.0
  %305 = vmatprep.subr.mxu0 0.0
  %306 = vmatpush2.msra.mxu0 0.0
  %307 = vmatprep.subr.mxu0 0.0
  %308 = vmatpush2.msra.mxu0 0.0
  %309 = vmatprep.subr.mxu0 0.0
  %310 = vmatpush2.msra.mxu0 0.0
  %311 = vmatprep.subr.mxu0 0.0
  %312 = vmatpush2.msra.mxu0 0.0
  %313 = vmatprep.subr.mxu0 0.0
  %314 = vmatpush2.msra.mxu0 0.0
  %315 = vmatprep.subr.mxu0 0.0
  %316 = vmatpush2.msra.mxu0 0.0
  %317 = vmatprep.subr.mxu0 0.0
  %318 = vmatpush2.msra.mxu0 0.0
  %319 = vmatprep.mubr.f32.mxu0 0.0
  %320 = vmatmul.mubr.f32.gmra.mxu0 %v246
  %v321 = vpop.f32.mrf.mxu0
  %v322 = vadd.f32 %v237, %v321
  %v323 = vpop.f32.mrf.mxu0
  %324 = vmatprep.mubr.f32.mxu0 0.0
  %325 = vmatmul.mubr.f32.gmra.mxu0 %v249
  %v326 = vpop.f32.mrf.mxu0
  %v327 = vadd.f32 %v242, %v326
  %v328 = vpop.f32.mrf.mxu0
  %329 = vdwg.mxu0
  %vm330 = vcmask 64512
  %v331 = vsel %vm330, %v322, -inf
  %vm332 = vcmask 58368
  %v333 = vsel %vm332, %v327, -inf
  %v334 = vmax.f32 %v331, %v333
  %v335 = vrot.slane %v334, 4
  %v336 = vmax.f32 %v334, %v335
  %v337 = vrot.slane %v336, 2
  %v338 = vmax.f32 %v336, %v337
  %v339 = vrot.slane %v338, 1
  %v340 = vmax.f32 %v338, %v339
  %v341 = vsub.f32 %v322, %v340
  %v342 = vsub.f32 %v327, %v340
  %v343 = vmul.f32 %v341, 1.442695
  %v344 = vpow.pop %v343
  %v345 = vmul.f32 %v342, 1.442695
  %v346 = vpow.pop %v345
  %v347 = vsel %vm330, %v344, 0.0
  %v348 = vsel %vm332, %v346, 0.0
  %v349 = vadd.f32 %v347, %v348
  %v350 = vrot.slane %v349, 4
  %v351 = vadd.f32 %v349, %v350
  %v352 = vrot.slane %v351, 2
  %v353 = vadd.f32 %v351, %v352
  %v354 = vrot.slane %v353, 1
  %v355 = vadd.f32 %v353, %v354
  %v356 = vrcp.pop %v355
  %v357 = vmul.f32 %v344, %v356
  %v358 = vmul.f32 %v346, %v356
  %359 = vst.msk [vmem:[%s7] sm:$0xff] %vm330, %v357
  %360 = vst.msk [vmem:[%s7 + $0x8] sm:$0x3] %vm332, %v358
  // Predicated region
  $region30: #{tpu_custom_call.1} parent=0 // pred_check
    _
  $region31: #{tpu_custom_call.1} parent=0 // pred_check_branch
    %362 = sbr.rel (0) target = $region33
  $region32: #{tpu_custom_call.1} parent=0 // pred_region
    _
  $region33: #{tpu_custom_call.1} parent=0 // pred_fallthru
    _
  // Predicated region
  $region34: #{tpu_custom_call.1} parent=0 // pred_check
    _
  $region35: #{tpu_custom_call.1} parent=0 // pred_check_branch
    %364 = sbr.rel (0) target = $region37
  $region36: #{tpu_custom_call.1} parent=0 // pred_region
    _
  $region37: #{tpu_custom_call.1} parent=0 // pred_fallthru
    _

</llo_original>
